<compile_context>
chip_gen: v7x
topology: tpu7x:2x2x1
jax: 0.10.0
libtpu: 0.0.40
codegen_flags: <defaults>
</compile_context>

<pallas_src>
import functools

import jax
import jax.numpy as jnp
from jax.experimental import pallas as pl
from jax.experimental.pallas import tpu as pltpu


_LANE = 128
_TILE_M_MAX = 512                      # >=512 rows amortizes per-step overhead; fits v7x VMEM too
_VMEM_LIMIT = 64 * 1024 * 1024         # raise above the 32 MiB scoped default (v6e); tiles stay small


def _round_up(x, m):
    return (x + m - 1) // m * m


# ----------------------------------------------------------------------------
# Pass A kernel: tiled matmul (bf16 in, f32 acc) + global BN statistics.
#   y_tile   = patches_tile @ W                          (TILE_M, Cp)
#   stats[0] = sum_m y[m, c],  stats[1] = sum_m y[m, c]^2  (accumulated over all M tiles;
#   the stats output block index is constant across the grid -> resident accumulator)
# ----------------------------------------------------------------------------
def _matmul_stats_kernel(p_ref, w_ref, y_ref, s_ref):
    i = pl.program_id(0)
    y = jnp.dot(p_ref[...], w_ref[...], preferred_element_type=jnp.float32)
    y_ref[...] = y

    @pl.when(i == 0)
    def _():
        s_ref[...] = jnp.zeros_like(s_ref)

    upd = jnp.concatenate(
        [jnp.sum(y, axis=0, keepdims=True),
         jnp.sum(y * y, axis=0, keepdims=True)], axis=0)
    s_ref[...] += upd


# ----------------------------------------------------------------------------
# Pass B kernel: out = y * scale + shift (+ residual) (ReLU), tiled over M.
# scale/shift fold gamma/beta/mean/var so the epilogue is a single FMA per element.
# ----------------------------------------------------------------------------
def _bn_act_kernel(*refs, apply_relu, has_residual):
    if has_residual:
        y_ref, scale_ref, shift_ref, res_ref, o_ref = refs
    else:
        y_ref, scale_ref, shift_ref, o_ref = refs
    out = y_ref[...] * scale_ref[...] + shift_ref[...]
    if has_residual:
        out = out + res_ref[...]
    if apply_relu:
        out = jnp.maximum(out, 0.0)
    o_ref[...] = out


def conv_bn_pallas(patches, w_mat, gamma, beta, *, residual=None, apply_relu, eps=1e-5):
    """maybe_relu( BN_batch(patches @ w_mat) [+ residual] ) with training-mode batch stats."""
    M, K = patches.shape
    Cout = w_mat.shape[1]
    Cp = _round_up(Cout, _LANE)                              # lane-dense output channels
    tile_m = _TILE_M_MAX if M >= _TILE_M_MAX else _round_up(M, 8)
    M_pad = _round_up(M, tile_m)
    grid_m = M_pad // tile_m

    # bf16 MXU operands, zero-padded rows / channel columns (zeros don't perturb sums).
    p = jnp.zeros((M_pad, K), jnp.bfloat16).at[:M, :].set(patches.astype(jnp.bfloat16))
    w = jnp.zeros((K, Cp), jnp.bfloat16).at[:, :Cout].set(w_mat.astype(jnp.bfloat16))

    y, stats = pl.pallas_call(
        _matmul_stats_kernel,
        out_shape=(jax.ShapeDtypeStruct((M_pad, Cp), jnp.float32),
                   jax.ShapeDtypeStruct((2, Cp), jnp.float32)),
        grid=(grid_m,),
        in_specs=[pl.BlockSpec((tile_m, K), lambda i: (i, 0)),
                  pl.BlockSpec((K, Cp), lambda i: (0, 0))],          # weights resident
        out_specs=(pl.BlockSpec((tile_m, Cp), lambda i: (i, 0)),
                   pl.BlockSpec((2, Cp), lambda i: (0, 0))),          # stats accumulator
        compiler_params=pltpu.CompilerParams(
            dimension_semantics=("arbitrary",),                       # global-stat reduction
            vmem_limit_bytes=_VMEM_LIMIT),
    )(p, w)

    # Finalize BN (tiny per-channel math). Padded rows are all-zero -> divide by the real M.
    mean = stats[0] / M
    var = jnp.maximum(stats[1] / M - mean * mean, 0.0)                # biased train-mode variance
    g = jnp.zeros((Cp,), jnp.float32).at[:Cout].set(gamma.astype(jnp.float32))
    b = jnp.zeros((Cp,), jnp.float32).at[:Cout].set(beta.astype(jnp.float32))
    scale = g * jax.lax.rsqrt(var + eps)
    shift = b - mean * scale

    has_residual = residual is not None
    operands = [y, scale.reshape(1, Cp), shift.reshape(1, Cp)]
    in_specs = [pl.BlockSpec((tile_m, Cp), lambda i: (i, 0)),
                pl.BlockSpec((1, Cp), lambda i: (0, 0)),
                pl.BlockSpec((1, Cp), lambda i: (0, 0))]
    if has_residual:
        r = jnp.zeros((M_pad, Cp), jnp.float32).at[:M, :Cout].set(residual.astype(jnp.float32))
        operands.append(r)
        in_specs.append(pl.BlockSpec((tile_m, Cp), lambda i: (i, 0)))

    out = pl.pallas_call(
        functools.partial(_bn_act_kernel, apply_relu=apply_relu, has_residual=has_residual),
        out_shape=jax.ShapeDtypeStruct((M_pad, Cp), jnp.float32),
        grid=(grid_m,),
        in_specs=in_specs,
        out_specs=pl.BlockSpec((tile_m, Cp), lambda i: (i, 0)),
        compiler_params=pltpu.CompilerParams(
            dimension_semantics=("parallel",),                        # independent row tiles
            vmem_limit_bytes=_VMEM_LIMIT),
    )(*operands)

    return out[:M, :Cout]


# ----------------------------------------------------------------------------
# Pure-JAX glue: im2col patch extraction and PyTorch weight reshaping
# ----------------------------------------------------------------------------
def im2col(x_nhwc, ksize, stride, pad):
    N, H, W, C = x_nhwc.shape
    xp = jnp.pad(x_nhwc, ((0, 0), (pad, pad), (pad, pad), (0, 0)))
    Ho = (H + 2 * pad - ksize) // stride + 1
    Wo = (W + 2 * pad - ksize) // stride + 1
    cols = []
    for dy in range(ksize):
        for dx in range(ksize):
            cols.append(xp[:, dy:dy + stride * Ho:stride, dx:dx + stride * Wo:stride, :])
    patches = jnp.concatenate(cols, axis=-1)          # (N, Ho, Wo, k*k*C)
    return patches.reshape(N * Ho * Wo, ksize * ksize * C), Ho, Wo


def torch_conv_weight_to_matmul(w):
    # PyTorch conv weight: (Cout, Cin, kH, kW) -> (kH*kW*Cin, Cout), matching im2col ordering.
    cout, cin, kh, kw = w.shape
    return jnp.transpose(w, (2, 3, 1, 0)).reshape(kh * kw * cin, cout)


# ----------------------------------------------------------------------------
# BasicBlockForResNet forward
# ----------------------------------------------------------------------------
def basic_block_forward(x_nchw, params, stride):
    x = jnp.transpose(x_nchw, (0, 2, 3, 1)).astype(jnp.float32)   # NCHW -> NHWC
    N, H, W, Cin = x.shape
    Cout = params["w1"].shape[0]

    # conv1 (3x3, stride=s, pad=1) + bn1 + relu
    # TODO(synk): im2col patches are still materialized in HBM; next optimization step is
    # building the 9 taps in-kernel from halo'd NHWC tiles and fusing conv1->conv2 per tile.
    p1, Ho, Wo = im2col(x, 3, stride, 1)
    M = N * Ho * Wo
    y1 = conv_bn_pallas(p1, torch_conv_weight_to_matmul(params["w1"]),
                        params["g1"], params["b1"], apply_relu=True)
    y1_nhwc = y1.reshape(N, Ho, Wo, Cout)

    # shortcut branch
    if stride != 1 or Cin != Cout:
        ps, _, _ = im2col(x, 1, stride, 0)            # 1x1 conv, stride=s, no pad
        shortcut = conv_bn_pallas(ps, torch_conv_weight_to_matmul(params["ws"]),
                                  params["gs"], params["bs"], apply_relu=False)
    else:
        shortcut = x.reshape(M, Cout)                 # identity

    # conv2 (3x3, stride=1, pad=1) + bn2 + residual add + relu (fused epilogue)
    p2, _, _ = im2col(y1_nhwc, 3, 1, 1)
    out = conv_bn_pallas(p2, torch_conv_weight_to_matmul(params["w2"]),
                         params["g2"], params["b2"], residual=shortcut, apply_relu=True)

    return jnp.transpose(out.reshape(N, Ho, Wo, Cout), (0, 3, 1, 2))   # NHWC -> NCHW


# ----------------------------------------------------------------------------
# Pure-JAX f32 reference (original module semantics) for correctness checking
# ----------------------------------------------------------------------------
def _ref_conv_bn(patches, w_mat, gamma, beta, residual=None, apply_relu=True, eps=1e-5):
    y = patches @ w_mat
    mean = jnp.mean(y, axis=0, keepdims=True)
    var = jnp.mean((y - mean) ** 2, axis=0, keepdims=True)
    y = (y - mean) * jax.lax.rsqrt(var + eps) * gamma.reshape(1, -1) + beta.reshape(1, -1)
    if residual is not None:
        y = y + residual
    return jnp.maximum(y, 0.0) if apply_relu else y


def reference_forward(x_nchw, params, stride):
    x = jnp.transpose(x_nchw, (0, 2, 3, 1)).astype(jnp.float32)
    N, H, W, Cin = x.shape
    Cout = params["w1"].shape[0]
    p1, Ho, Wo = im2col(x, 3, stride, 1)
    M = N * Ho * Wo
    y1 = _ref_conv_bn(p1, torch_conv_weight_to_matmul(params["w1"]),
                      params["g1"], params["b1"], None, True)
    y1_nhwc = y1.reshape(N, Ho, Wo, Cout)
    if stride != 1 or Cin != Cout:
        ps, _, _ = im2col(x, 1, stride, 0)
        shortcut = _ref_conv_bn(ps, torch_conv_weight_to_matmul(params["ws"]),
                                params["gs"], params["bs"], None, False)
    else:
        shortcut = x.reshape(M, Cout)
    p2, _, _ = im2col(y1_nhwc, 3, 1, 1)
    out = _ref_conv_bn(p2, torch_conv_weight_to_matmul(params["w2"]),
                       params["g2"], params["b2"], shortcut, True)
    return jnp.transpose(out.reshape(N, Ho, Wo, Cout), (0, 3, 1, 2))


# ----------------------------------------------------------------------------
# Deterministic parameter init (shapes follow BasicBlockForResNet.__init__)
# ----------------------------------------------------------------------------
def init_params(key, in_channels, out_channels, stride):
    ks = jax.random.split(key, 6)
    params = {
        "w1": 0.1 * jax.random.normal(ks[0], (out_channels, in_channels, 3, 3), jnp.float32),
        "g1": 1.0 + 0.05 * jax.random.normal(ks[1], (out_channels,), jnp.float32),
        "b1": 0.05 * jax.random.normal(ks[2], (out_channels,), jnp.float32),
        "w2": 0.1 * jax.random.normal(ks[3], (out_channels, out_channels, 3, 3), jnp.float32),
        "g2": 1.0 + 0.05 * jax.random.normal(ks[4], (out_channels,), jnp.float32),
        "b2": 0.05 * jax.random.normal(ks[5], (out_channels,), jnp.float32),
    }
    if stride != 1 or in_channels != out_channels:
        ks2 = jax.random.split(ks[0], 3)
        params["ws"] = 0.1 * jax.random.normal(ks2[0], (out_channels, in_channels, 1, 1), jnp.float32)
        params["gs"] = 1.0 + 0.05 * jax.random.normal(ks2[1], (out_channels,), jnp.float32)
        params["bs"] = 0.05 * jax.random.normal(ks2[2], (out_channels,), jnp.float32)
    return params


if __name__ == "__main__":
    # TODO(synk): BatchNorm running-statistic buffer updates (training side effect) are not
    # modeled; they do not affect the forward output.
    key = jax.random.PRNGKey(0)

    configs = [
        # (N, Cin, Cout, H, W, stride)
        (2, 4, 8, 16, 16, 2),    # downsampling block -> conv+BN shortcut path
        (2, 8, 8, 32, 32, 1),    # identity shortcut, M=2048 -> multiple M tiles (cross-tile BN stats)
    ]
    for idx, (N, Cin, Cout, H, W, stride) in enumerate(configs):
        kx, kp = jax.random.split(jax.random.fold_in(key, idx))
        x = jax.random.normal(kx, (N, Cin, H, W), jnp.float32)
        params = init_params(kp, Cin, Cout, stride)

        out = jax.block_until_ready(basic_block_forward(x, params, stride))
        ref = jax.block_until_ready(reference_forward(x, params, stride))

        assert out.shape == (N, Cout, H // stride, W // stride), out.shape
        max_err = float(jnp.max(jnp.abs(out - ref)))
        # bf16 MXU inputs (f32 accumulation) vs a pure-f32 reference -> relaxed tolerance.
        assert jnp.allclose(out, ref, atol=3e-2, rtol=3e-2), max_err

    print("KERNEL_OK")
</pallas_src>

<mosaic_0001>
module attributes {stable_mosaic.version = 11 : i64} {
  func.func @_matmul_stats_kernel(%arg0: i32, %arg1: memref<128x36xbf16, #tpu.memory_space<vmem>>, %arg2: memref<36x128xbf16, #tpu.memory_space<vmem>>, %arg3: memref<128x128xf32, #tpu.memory_space<vmem>>, %arg4: memref<2x128xf32, #tpu.memory_space<vmem>>) attributes {dimension_semantics = [#tpu.dimension_semantics<arbitrary>], iteration_bounds = array<i64: 1>, scalar_prefetch = 0 : i64, scratch_operands = 0 : i64, tpu.core_type = #tpu.core_type<tc>, window_params = [{transform_indices = @transform_0, window_bounds = array<i64: 128, 36>}, {pipeline_mode = #tpu.pipeline_mode<synchronous>, transform_indices = @transform_1, window_bounds = array<i64: 36, 128>}, {transform_indices = @transform_2, window_bounds = array<i64: 128, 128>}, {pipeline_mode = #tpu.pipeline_mode<synchronous>, transform_indices = @transform_3, window_bounds = array<i64: 2, 128>}]} {
    %c0 = arith.constant 0 : index
    %c0_0 = arith.constant 0 : index
    %0 = vector.load %arg1[%c0, %c0_0] : memref<128x36xbf16, #tpu.memory_space<vmem>>, vector<128x36xbf16>
    %c0_1 = arith.constant 0 : index
    %c0_2 = arith.constant 0 : index
    %1 = vector.load %arg2[%c0_1, %c0_2] : memref<36x128xbf16, #tpu.memory_space<vmem>>, vector<36x128xbf16>
    %cst = arith.constant dense<0.000000e+00> : vector<128x128xf32>
    %2 = tpu.matmul %0, %1, %cst {dimension_numbers = #tpu.dot_dimension_numbers<[1], [0], [0], [1], [0, 0, 1, 1], [], []>} : vector<128x36xbf16>, vector<36x128xbf16>, vector<128x128xf32> -> vector<128x128xf32>
    %c0_3 = arith.constant 0 : index
    %c0_4 = arith.constant 0 : index
    %3 = vector.load %arg3[%c0_3, %c0_4] : memref<128x128xf32, #tpu.memory_space<vmem>>, vector<128x128xf32>
    tpu.vector_store %arg3[%c0_3, %c0_4], %2 {strides = array<i32>} : memref<128x128xf32, #tpu.memory_space<vmem>>, vector<128x128xf32>,
    %c0_i32 = arith.constant 0 : i32
    %4 = arith.cmpi eq, %arg0, %c0_i32 : i32
    %5 = arith.extui %4 : i1 to i32
    %c0_i32_5 = arith.constant 0 : i32
    %6 = arith.cmpi ne, %5, %c0_i32_5 : i32
    scf.if %6 {
      %cst_12 = arith.constant 0.000000e+00 : f32
      %16 = vector.broadcast %cst_12 : f32 to vector<2x128xf32>
      %c0_13 = arith.constant 0 : index
      %c0_14 = arith.constant 0 : index
      %17 = vector.load %arg4[%c0_13, %c0_14] : memref<2x128xf32, #tpu.memory_space<vmem>>, vector<2x128xf32>
      tpu.vector_store %arg4[%c0_13, %c0_14], %16 {strides = array<i32>} : memref<2x128xf32, #tpu.memory_space<vmem>>, vector<2x128xf32>,
    } else {
    }
    %cst_6 = arith.constant dense<0.000000e+00> : vector<128xf32>
    %7 = vector.multi_reduction <add>, %2, %cst_6 [0] : vector<128x128xf32> to vector<128xf32>
    %8 = vector.shape_cast %7 : vector<128xf32> to vector<1x128xf32>
    %9 = arith.mulf %2, %2 : vector<128x128xf32>
    %cst_7 = arith.constant dense<0.000000e+00> : vector<128xf32>
    %10 = vector.multi_reduction <add>, %9, %cst_7 [0] : vector<128x128xf32> to vector<128xf32>
    %11 = vector.shape_cast %10 : vector<128xf32> to vector<1x128xf32>
    %12 = tpu.concatenate %8, %11 in 0 : vector<1x128xf32>, vector<1x128xf32> -> vector<2x128xf32>
    %c0_8 = arith.constant 0 : index
    %c0_9 = arith.constant 0 : index
    %13 = vector.load %arg4[%c0_8, %c0_9] : memref<2x128xf32, #tpu.memory_space<vmem>>, vector<2x128xf32>
    %14 = arith.addf %13, %12 : vector<2x128xf32>
    %c0_10 = arith.constant 0 : index
    %c0_11 = arith.constant 0 : index
    %15 = vector.load %arg4[%c0_10, %c0_11] : memref<2x128xf32, #tpu.memory_space<vmem>>, vector<2x128xf32>
    tpu.vector_store %arg4[%c0_10, %c0_11], %14 {strides = array<i32>} : memref<2x128xf32, #tpu.memory_space<vmem>>, vector<2x128xf32>,
    return
  }
  func.func @transform_0(%arg0: i32) -> (i32, i32) {
    %c0_i32 = arith.constant 0 : i32
    %c0_i32_0 = arith.constant 0 : i32
    return %arg0, %c0_i32 : i32, i32
  }
  func.func @transform_1(%arg0: i32) -> (i32, i32) {
    %c0_i32 = arith.constant 0 : i32
    %c0_i32_0 = arith.constant 0 : i32
    %c0_i32_1 = arith.constant 0 : i32
    return %c0_i32, %c0_i32_0 : i32, i32
  }
  func.func @transform_2(%arg0: i32) -> (i32, i32) {
    %c0_i32 = arith.constant 0 : i32
    %c0_i32_0 = arith.constant 0 : i32
    return %arg0, %c0_i32 : i32, i32
  }
  func.func @transform_3(%arg0: i32) -> (i32, i32) {
    %c0_i32 = arith.constant 0 : i32
    %c0_i32_0 = arith.constant 0 : i32
    %c0_i32_1 = arith.constant 0 : i32
    return %c0_i32, %c0_i32_0 : i32, i32
  }
}

</mosaic_0001>

<llo_original>
// kernel: tpu_custom_call.1
$region0: #{tpu_custom_call.1}
  #allocation0 [shape = 'u32[]', space=smem, size = 0x4, offset = 0x4, fixed_abs, tag = 'smem constant byte address 0x4 - core index']
  #allocation1 [shape = 'u32[144,128]{1,0:T(1,128)}', space=vmem, size = 0x12000, scoped, tag = 'internal scratch']
  %s0 = inlined_call_operand.hbm [shape: bf16[128,36], index: 0, kind: input, shape index: {}]
  %s1 = inlined_call_operand.hbm [shape: bf16[36,128], index: 1, kind: input, shape index: {}]
  %s2 = inlined_call_operand.hbm [shape: f32[128,128], index: 2, kind: output, shape index: {0}]
  %s3 = inlined_call_operand.hbm [shape: f32[2,128], index: 3, kind: output, shape index: {1}]
  %4 = xla_tuple %s2, %s3
  %s5 = sld [smem:[#allocation0]]
  $region38: #{tpu_custom_call.1} parent=0
    _
  %s7 = ssub.s32 1, %s5
  %s8 = scalar_select 0, %s7, %s5
  $region1: #{tpu_custom_call.1} parent=0
    #allocation2 [shape = 'u8[32768]{0}', space=vmem, size = 0x8000, scoped, tag = 'input window, operand 0, single buffered']
    #allocation3 [shape = 's32[1]{0}', space=sflag, size = 0x4, scoped, tag = 'scoped memory for tpu_custom_call.1']
    #allocation4 [shape = 's32[1]{0}', space=sflag, size = 0x4, scoped, tag = 'scoped memory for tpu_custom_call.1']
    #allocation5 [shape = 'u8[10240]{0}', space=vmem, size = 0x2800, scoped, tag = 'input window, operand 1, single buffered']
    #allocation6 [shape = 's32[1]{0}', space=sflag, size = 0x4, scoped, tag = 'scoped memory for tpu_custom_call.1']
    #allocation7 [shape = 'u8[65536]{0}', space=vmem, size = 0x10000, scoped, tag = 'output window, operand 0, single buffered']
    #allocation8 [shape = 'u8[1024]{0}', space=vmem, size = 0x400, scoped, tag = 'output window, operand 1, single buffered']
    #allocation9 [shape = 's32[1]{0}', space=sflag, size = 0x4, scoped, tag = 'scoped memory for tpu_custom_call.1']
    %9 = vsyncpa [#allocation3], 0
    %10 = vsyncpa [#allocation6], 0
    %11 = vsyncpa [#allocation4], 0
    %12 = vsyncpa [#allocation9], 0
    // Predicated region
    $region2: #{tpu_custom_call.1} parent=1 // pred_check
      _
    $region3: #{tpu_custom_call.1} parent=1 // pred_check_branch
      %14 = sbr.rel (0) target = $region5
    $region4: #{tpu_custom_call.1} parent=1 // pred_region
      %s16 = ssub.s32 1024, 1024
      %17 = vsyncadd [#allocation3], %s16
      %s18 = sshll.u32 [#allocation2], 4
      %s19 = int_to_ptr.vmem [resolvable:$true] %s18
      %24 = dma.hbm_to_vmem [thread:$0]  %s0, 1024, %s19, [#allocation3], 64, 64, 4
    $region5: #{tpu_custom_call.1} parent=1 // pred_fallthru
      _
    // Predicated region
    $region6: #{tpu_custom_call.1} parent=1 // pred_check
      _
    $region7: #{tpu_custom_call.1} parent=1 // pred_check_branch
      %26 = sbr.rel (0) target = $region9
    $region8: #{tpu_custom_call.1} parent=1 // pred_region
      %s28 = ssub.s32 320, 320
      %29 = vsyncadd [#allocation6], %s28
      %s30 = sshll.u32 [#allocation5], 4
      %s31 = int_to_ptr.vmem [resolvable:$true] %s30
      %36 = dma.hbm_to_vmem [thread:$0]  %s1, 320, %s31, [#allocation6], 64, 64, 4
    $region9: #{tpu_custom_call.1} parent=1 // pred_fallthru
      _
    // Predicated region
    $region10: #{tpu_custom_call.1} parent=1 // pred_check
      _
    $region11: #{tpu_custom_call.1} parent=1 // pred_check_branch
      %38 = sbr.rel (0) target = $region13
    $region12: #{tpu_custom_call.1} parent=1 // pred_region
      %39 = dma.done [#allocation3], 1024
    $region13: #{tpu_custom_call.1} parent=1 // pred_fallthru
      _
    // Predicated region
    $region14: #{tpu_custom_call.1} parent=1 // pred_check
      _
    $region15: #{tpu_custom_call.1} parent=1 // pred_check_branch
      %41 = sbr.rel (0) target = $region17
    $region16: #{tpu_custom_call.1} parent=1 // pred_region
      %42 = dma.done [#allocation6], 320
    $region17: #{tpu_custom_call.1} parent=1 // pred_fallthru
      _
    %v44 = vld [vmem:[#allocation2] sm:$0xf]
    %v45 = vld [vmem:[#allocation2 + $0x4] sm:$0xf]
    %v46 = vld [vmem:[#allocation2 + $0x8] sm:$0xf]
    %v47 = vld [vmem:[#allocation2 + $0xc] sm:$0xf]
    %v48 = vld [vmem:[#allocation2 + $0x10] sm:$0xf]
    %v49 = vld [vmem:[#allocation2 + $0x14] sm:$0xf]
    %v50 = vld [vmem:[#allocation2 + $0x18] sm:$0xf]
    %v51 = vld [vmem:[#allocation2 + $0x1c] sm:$0xf]
    %v52 = vld [vmem:[#allocation2 + $0x20] sm:$0xf]
    %v53 = vld [vmem:[#allocation2 + $0x24] sm:$0xf]
    %v54 = vld [vmem:[#allocation2 + $0x28] sm:$0xf]
    %v55 = vld [vmem:[#allocation2 + $0x2c] sm:$0xf]
    %v56 = vld [vmem:[#allocation2 + $0x30] sm:$0xf]
    %v57 = vld [vmem:[#allocation2 + $0x34] sm:$0xf]
    %v58 = vld [vmem:[#allocation2 + $0x38] sm:$0xf]
    %v59 = vld [vmem:[#allocation2 + $0x3c] sm:$0xf]
    %v60 = vld [vmem:[#allocation5] sm:$0xf]
    %v61 = vld [vmem:[#allocation5 + $0x4] sm:$0xf]
    %v62 = vld [vmem:[#allocation5 + $0x8] sm:$0xf]
    %v63 = vld [vmem:[#allocation5 + $0xc] sm:$0xf]
    %v64 = vld [vmem:[#allocation5 + $0x10] sm:$0x3]
    %v81 = vunpack.c.l.b16 %v44
    %v82 = vunpack.c.l.b16 %v45
    %v83 = vunpack.c.l.b16 %v46
    %v84 = vunpack.c.l.b16 %v47
    %v85 = vunpack.c.l.b16 %v48
    %v86 = vunpack.c.l.b16 %v49
    %v87 = vunpack.c.l.b16 %v50
    %v88 = vunpack.c.l.b16 %v51
    %v89 = vunpack.c.l.b16 %v52
    %v90 = vunpack.c.l.b16 %v53
    %v91 = vunpack.c.l.b16 %v54
    %v92 = vunpack.c.l.b16 %v55
    %v93 = vunpack.c.l.b16 %v56
    %v94 = vunpack.c.l.b16 %v57
    %v95 = vunpack.c.l.b16 %v58
    %v96 = vunpack.c.l.b16 %v59
    %v97 = vpack.c.b16 %v82, %v81
    %v98 = vpack.c.b16 %v84, %v83
    %v99 = vpack.c.b16 %v86, %v85
    %v100 = vpack.c.b16 %v88, %v87
    %v101 = vpack.c.b16 %v90, %v89
    %v102 = vpack.c.b16 %v92, %v91
    %v103 = vpack.c.b16 %v94, %v93
    %v104 = vpack.c.b16 %v96, %v95
    %v110 = vunpack.c.l.b16 %v60
    %v111 = vunpack.c.l.b16 %v61
    %v112 = vunpack.c.l.b16 %v62
    %v113 = vunpack.c.l.b16 %v63
    %v114 = vunpack.c.l.b16 %v64
    %v115 = vpack.c.b16 %v111, %v110
    %v116 = vpack.c.b16 %v113, %v112
    %v117 = vpack.c.b16 %v114, %v114
    %vm120 = vcmask 293888
    %v122 = vsel %vm120, %v97, 0
    %v125 = vsel %vm120, %v98, 0
    %v128 = vsel %vm120, %v99, 0
    %v131 = vsel %vm120, %v100, 0
    %v134 = vsel %vm120, %v101, 0
    %v137 = vsel %vm120, %v102, 0
    %v140 = vsel %vm120, %v103, 0
    %v143 = vsel %vm120, %v104, 0
    %vm145 = vcmask 1041408
    %v147 = vsel %vm145, %v117, 0
    %149 = vmatprep.subr.bf16.mxu0 0
    %150 = vmatpush1.bf16.msra.mxu0 %v115
    %151 = vmatprep.subr.bf16.mxu0 0
    %152 = vmatpush1.bf16.msra.mxu0 %v116
    %153 = vmatprep.subr.bf16.mxu0 0
    %154 = vmatpush1.bf16.msra.mxu0 %v147
    %155 = vmatprep.subr.bf16.mxu0 0
    %156 = vmatpush1.bf16.msra.mxu0 0
    %157 = vmatprep.subr.bf16.mxu0 0
    %158 = vmatpush1.bf16.msra.mxu0 0
    %159 = vmatprep.subr.bf16.mxu0 0
    %160 = vmatpush1.bf16.msra.mxu0 0
    %161 = vmatprep.subr.bf16.mxu0 0
    %162 = vmatpush1.bf16.msra.mxu0 0
    %163 = vmatprep.subr.bf16.mxu0 0
    %164 = vmatpush1.bf16.msra.mxu0 0
    %165 = vmatprep.subr.bf16.mxu0 0
    %166 = vmatpush1.bf16.msra.mxu0 0
    %167 = vmatprep.subr.bf16.mxu0 0
    %168 = vmatpush1.bf16.msra.mxu0 0
    %169 = vmatprep.subr.bf16.mxu0 0
    %170 = vmatpush1.bf16.msra.mxu0 0
    %171 = vmatprep.subr.bf16.mxu0 0
    %172 = vmatpush1.bf16.msra.mxu0 0
    %173 = vmatprep.subr.bf16.mxu0 0
    %174 = vmatpush1.bf16.msra.mxu0 0
    %175 = vmatprep.subr.bf16.mxu0 0
    %176 = vmatpush1.bf16.msra.mxu0 0
    %177 = vmatprep.subr.bf16.mxu0 0
    %178 = vmatpush1.bf16.msra.mxu0 0
    %179 = vmatprep.subr.bf16.mxu0 0
    %180 = vmatpush1.bf16.msra.mxu0 0
    %181 = vmatprep.mubr.bf16.mxu0 0
    %182 = vmatmul.mubr.bf16.gmra.mrb[0].mxu0 %v122
    %v183 = vpop.f32.mrb[0].mxu0
    %v184 = vadd.f32 0.0, %v183
    %v185 = vpop.f32.mrb[0].mxu0
    %v186 = vpop.f32.mrb[0].mxu0
    %v187 = vadd.f32 0.0, %v186
    %v188 = vpop.f32.mrb[0].mxu0
    %189 = vmatprep.mubr.bf16.mxu0 0
    %190 = vmatmul.mubr.bf16.gmra.mrb[0].mxu0 %v125
    %v191 = vpop.f32.mrb[0].mxu0
    %v192 = vadd.f32 0.0, %v191
    %v193 = vpop.f32.mrb[0].mxu0
    %v194 = vpop.f32.mrb[0].mxu0
    %v195 = vadd.f32 0.0, %v194
    %v196 = vpop.f32.mrb[0].mxu0
    %197 = vmatprep.mubr.bf16.mxu0 0
    %198 = vmatmul.mubr.bf16.gmra.mrb[0].mxu0 %v128
    %v199 = vpop.f32.mrb[0].mxu0
    %v200 = vadd.f32 0.0, %v199
    %v201 = vpop.f32.mrb[0].mxu0
    %v202 = vpop.f32.mrb[0].mxu0
    %v203 = vadd.f32 0.0, %v202
    %v204 = vpop.f32.mrb[0].mxu0
    %205 = vmatprep.mubr.bf16.mxu0 0
    %206 = vmatmul.mubr.bf16.gmra.mrb[0].mxu0 %v131
    %v207 = vpop.f32.mrb[0].mxu0
    %v208 = vadd.f32 0.0, %v207
    %v209 = vpop.f32.mrb[0].mxu0
    %v210 = vpop.f32.mrb[0].mxu0
    %v211 = vadd.f32 0.0, %v210
    %v212 = vpop.f32.mrb[0].mxu0
    %213 = vmatprep.mubr.bf16.mxu0 0
    %214 = vmatmul.mubr.bf16.gmra.mrb[0].mxu0 %v134
    %v215 = vpop.f32.mrb[0].mxu0
    %v216 = vadd.f32 0.0, %v215
    %v217 = vpop.f32.mrb[0].mxu0
    %v218 = vpop.f32.mrb[0].mxu0
    %v219 = vadd.f32 0.0, %v218
    %v220 = vpop.f32.mrb[0].mxu0
    %221 = vmatprep.mubr.bf16.mxu0 0
    %222 = vmatmul.mubr.bf16.gmra.mrb[0].mxu0 %v137
    %v223 = vpop.f32.mrb[0].mxu0
    %v224 = vadd.f32 0.0, %v223
    %v225 = vpop.f32.mrb[0].mxu0
    %v226 = vpop.f32.mrb[0].mxu0
    %v227 = vadd.f32 0.0, %v226
    %v228 = vpop.f32.mrb[0].mxu0
    %229 = vmatprep.mubr.bf16.mxu0 0
    %230 = vmatmul.mubr.bf16.gmra.mrb[0].mxu0 %v140
    %v231 = vpop.f32.mrb[0].mxu0
    %v232 = vadd.f32 0.0, %v231
    %v233 = vpop.f32.mrb[0].mxu0
    %v234 = vpop.f32.mrb[0].mxu0
    %v235 = vadd.f32 0.0, %v234
    %v236 = vpop.f32.mrb[0].mxu0
    %237 = vmatprep.mubr.bf16.mxu0 0
    %238 = vmatmul.mubr.bf16.gmra.mrb[0].mxu0 %v143
    %v239 = vpop.f32.mrb[0].mxu0
    %v240 = vadd.f32 0.0, %v239
    %v241 = vpop.f32.mrb[0].mxu0
    %v242 = vpop.f32.mrb[0].mxu0
    %v243 = vadd.f32 0.0, %v242
    %v244 = vpop.f32.mrb[0].mxu0
    %245 = vdwg.mxu0
    %246 = vst [vmem:[#allocation7] sm:$0xff] %v184
    %247 = vst [vmem:[#allocation7 + $0x8] sm:$0xff] %v187
    %248 = vst [vmem:[#allocation7 + $0x10] sm:$0xff] %v192
    %249 = vst [vmem:[#allocation7 + $0x18] sm:$0xff] %v195
    %250 = vst [vmem:[#allocation7 + $0x20] sm:$0xff] %v200
    %251 = vst [vmem:[#allocation7 + $0x28] sm:$0xff] %v203
    %252 = vst [vmem:[#allocation7 + $0x30] sm:$0xff] %v208
    %253 = vst [vmem:[#allocation7 + $0x38] sm:$0xff] %v211
    %254 = vst [vmem:[#allocation7 + $0x40] sm:$0xff] %v216
    %255 = vst [vmem:[#allocation7 + $0x48] sm:$0xff] %v219
    %256 = vst [vmem:[#allocation7 + $0x50] sm:$0xff] %v224
    %257 = vst [vmem:[#allocation7 + $0x58] sm:$0xff] %v227
    %258 = vst [vmem:[#allocation7 + $0x60] sm:$0xff] %v232
    %259 = vst [vmem:[#allocation7 + $0x68] sm:$0xff] %v235
    %260 = vst [vmem:[#allocation7 + $0x70] sm:$0xff] %v240
    %261 = vst [vmem:[#allocation7 + $0x78] sm:$0xff] %v243
    %p262 = scmp.eq.s32.totalorder 0, 0
    // Predicated region
    $region18: #{tpu_custom_call.1} parent=1 // pred_check
      %p263 = pneg %p262
    $region19: #{tpu_custom_call.1} parent=1 // pred_check_branch
      %265 = sbr.rel (%p263) target = $region21
    $region20: #{tpu_custom_call.1} parent=1 // pred_region
      %266 = vst [vmem:[#allocation8] sm:$0x3] 0.0
    $region21: #{tpu_custom_call.1} parent=1 // pred_fallthru
      _
    %v267 = vadd.f32 %v184, %v187
    %v268 = vadd.f32 %v267, %v192
    %v269 = vadd.f32 %v268, %v195
    %v270 = vadd.f32 %v269, %v200
    %v271 = vadd.f32 %v270, %v203
    %v272 = vadd.f32 %v271, %v208
    %v273 = vadd.f32 %v272, %v211
    %v274 = vadd.f32 %v273, %v216
    %v275 = vadd.f32 %v274, %v219
    %v276 = vadd.f32 %v275, %v224
    %v277 = vadd.f32 %v276, %v227
    %v278 = vadd.f32 %v277, %v232
    %v279 = vadd.f32 %v278, %v235
    %v280 = vadd.f32 %v279, %v240
    %v281 = vadd.f32 %v280, %v243
    %v282 = vrot.slane %v281, 4
    %v283 = vadd.f32 %v281, %v282
    %v284 = vrot.slane %v283, 2
    %v285 = vadd.f32 %v283, %v284
    %v286 = vrot.slane %v285, 1
    %v287 = vadd.f32 %v285, %v286
    %v288 = vmul.f32 %v184, %v184
    %v289 = vmul.f32 %v187, %v187
    %v290 = vmul.f32 %v192, %v192
    %v291 = vmul.f32 %v195, %v195
    %v292 = vmul.f32 %v200, %v200
    %v293 = vmul.f32 %v203, %v203
    %v294 = vmul.f32 %v208, %v208
    %v295 = vmul.f32 %v211, %v211
    %v296 = vmul.f32 %v216, %v216
    %v297 = vmul.f32 %v219, %v219
    %v298 = vmul.f32 %v224, %v224
    %v299 = vmul.f32 %v227, %v227
    %v300 = vmul.f32 %v232, %v232
    %v301 = vmul.f32 %v235, %v235
    %v302 = vmul.f32 %v240, %v240
    %v303 = vmul.f32 %v243, %v243
    %v304 = vadd.f32 %v288, %v289
    %v305 = vadd.f32 %v304, %v290
    %v306 = vadd.f32 %v305, %v291
    %v307 = vadd.f32 %v306, %v292
    %v308 = vadd.f32 %v307, %v293
    %v309 = vadd.f32 %v308, %v294
    %v310 = vadd.f32 %v309, %v295
    %v311 = vadd.f32 %v310, %v296
    %v312 = vadd.f32 %v311, %v297
    %v313 = vadd.f32 %v312, %v298
    %v314 = vadd.f32 %v313, %v299
    %v315 = vadd.f32 %v314, %v300
    %v316 = vadd.f32 %v315, %v301
    %v317 = vadd.f32 %v316, %v302
    %v318 = vadd.f32 %v317, %v303
    %v319 = vrot.slane %v318, 4
    %v320 = vadd.f32 %v318, %v319
    %v321 = vrot.slane %v320, 2
    %v322 = vadd.f32 %v320, %v321
    %v323 = vrot.slane %v322, 1
    %v324 = vadd.f32 %v322, %v323
    %vm325 = vcmask 1040384
    %v326 = vsel %vm325, %v287, %v324
    %v327 = vld [vmem:[#allocation8] sm:$0x3]
    %v328 = vadd.f32 %v327, %v326
    %329 = vst [vmem:[#allocation8] sm:$0x3] %v328
    // Predicated region
    $region22: #{tpu_custom_call.1} parent=1 // pred_check
      _
    $region23: #{tpu_custom_call.1} parent=1 // pred_check_branch
      %331 = sbr.rel (0) target = $region25
    $region24: #{tpu_custom_call.1} parent=1 // pred_region
      %s333 = ssub.s32 2048, 2048
      %334 = vsyncadd [#allocation4], %s333
      %s335 = sshll.u32 [#allocation7], 4
      %s336 = int_to_ptr.vmem [resolvable:$true] %s335
      %341 = dma.vmem_to_hbm [thread:$0]  %s336, 2048, %s2, [#allocation4], 128, 128, 8
    $region25: #{tpu_custom_call.1} parent=1 // pred_fallthru
      _
    // Predicated region
    $region26: #{tpu_custom_call.1} parent=1 // pred_check
      _
    $region27: #{tpu_custom_call.1} parent=1 // pred_check_branch
      %343 = sbr.rel (0) target = $region29
    $region28: #{tpu_custom_call.1} parent=1 // pred_region
      %s345 = ssub.s32 32, 32
      %346 = vsyncadd [#allocation9], %s345
      %s348 = sshll.u32 [#allocation8], 4
      %s349 = int_to_ptr.vmem [resolvable:$true] %s348
      %351 = dma.vmem_to_hbm [thread:$0]  %s349, 32, %s3, [#allocation9]
    $region29: #{tpu_custom_call.1} parent=1 // pred_fallthru
      _
    // Predicated region
    $region30: #{tpu_custom_call.1} parent=1 // pred_check
      _
    $region31: #{tpu_custom_call.1} parent=1 // pred_check_branch
      %353 = sbr.rel (0) target = $region33
    $region32: #{tpu_custom_call.1} parent=1 // pred_region
      %354 = dma.done [#allocation4], 2048
    $region33: #{tpu_custom_call.1} parent=1 // pred_fallthru
      _
    // Predicated region
    $region34: #{tpu_custom_call.1} parent=1 // pred_check
      _
    $region35: #{tpu_custom_call.1} parent=1 // pred_check_branch
      %356 = sbr.rel (0) target = $region37
    $region36: #{tpu_custom_call.1} parent=1 // pred_region
      %357 = dma.done [#allocation9], 32
    $region37: #{tpu_custom_call.1} parent=1 // pred_fallthru
      _
    %358 = vsyncpa [#allocation3], 1
    %359 = vsyncpa [#allocation6], 1
    %360 = vsyncpa [#allocation4], 1
    %361 = vsyncpa [#allocation9], 1

</llo_original>
